<compile_context>
chip_gen: v5e
topology: v5e:2x2
jax: 0.10.0
libtpu: 0.0.40
codegen_flags: <defaults>
</compile_context>

<pallas_src>
import jax
import jax.numpy as jnp
from jax.experimental import pallas as pl
from jax.experimental.pallas import tpu as pltpu

LANE = 128  # TPU lane width


def _round_up(x, m):
    return ((x + m - 1) // m) * m


def actor_kernel(obs_ref, laser_ref,
                 wpre_ref, bpre_ref,
                 w1o_ref, w1r_ref,
                 w2_ref, b2_ref,
                 w3_ref, b3_ref,
                 out_ref):
    # PreFC + relu into a 128-lane slab. Lanes [0, las_output) are the real PreFC
    # outputs; lane `las_output` carries a constant 1.0 after relu (bias trick so
    # b1 rides along the FC1 matmul); all remaining lanes are relu(0) = 0.
    h0 = jnp.dot(laser_ref[...], wpre_ref[...], preferred_element_type=jnp.float32)
    h0 = jnp.maximum(h0 + bpre_ref[...], 0.0)

    # FC1 with the concat fused away: obs part (K = dim_obs) + PreFC/bias part
    # (K = 128, padded rows zero). No lane placement, no explicit + b1.
    h1 = (jnp.dot(obs_ref[...], w1o_ref[...], preferred_element_type=jnp.float32)
          + jnp.dot(h0.astype(jnp.bfloat16), w1r_ref[...],
                    preferred_element_type=jnp.float32))
    h1 = jnp.maximum(h1, 0.0)

    # FC2 padded to a full 128-lane output (padded cols of w2/b2 are zero, so the
    # padded lanes of h2 are exactly relu(0) = 0).
    h2 = jnp.dot(h1.astype(jnp.bfloat16), w2_ref[...],
                 preferred_element_type=jnp.float32) + b2_ref[...]
    h2 = jnp.maximum(h2, 0.0)

    # FC3 padded to a lane-dense 128-wide output slab (cols >= dim_action are 0).
    h3 = jnp.dot(h2.astype(jnp.bfloat16), w3_ref[...],
                 preferred_element_type=jnp.float32) + b3_ref[...]
    out_ref[...] = (jnp.tanh(h3) * 0.5).astype(out_ref.dtype)


def actor_forward(obs, laser, kparams, dim_action, *,
                  max_tile_b=4096, split_threshold=512):
    """obs: (B, dim_obs) f32, laser: (B, dim_laser) f32 -> (B, dim_action) f32."""
    B, dim_obs = obs.shape
    dim_laser = laser.shape[1]
    hidden = kparams["w1r"].shape[1]
    second_pad = kparams["w2"].shape[1]

    # Tiling policy:
    #  - small B: a single fat step (grid steps are pure overhead on a single TC)
    #  - large B: an even number of steps >= 2 so "parallel" batch sharding keeps
    #    both v7x TensorCores busy, capped at max_tile_b rows/step for VMEM headroom.
    b_pad = _round_up(B, 8)
    if b_pad <= split_threshold:
        steps = 1
    else:
        steps = max(2, -(-b_pad // max_tile_b))
        steps += steps % 2  # even -> splits cleanly across 2 TCs
    tile_b = _round_up(-(-b_pad // steps), 8)
    b_pad = tile_b * steps

    # Streamed activations in bf16 at natural widths (they feed the MXU as bf16
    # anyway); only pad the batch dim when needed.
    obs_bf = obs.astype(jnp.bfloat16)
    laser_bf = laser.astype(jnp.bfloat16)
    if b_pad != B:
        obs_bf = jnp.zeros((b_pad, dim_obs), jnp.bfloat16).at[:B].set(obs_bf)
        laser_bf = jnp.zeros((b_pad, dim_laser), jnp.bfloat16).at[:B].set(laser_bf)

    def act_spec(feat):  # per-grid-step activation tile
        return pl.BlockSpec((tile_b, feat), lambda i: (i, 0))

    def resident(shape):  # weights/biases: constant block index -> stay in VMEM
        return pl.BlockSpec(shape, lambda i: (0, 0))

    flops = 2 * b_pad * (dim_laser * LANE + dim_obs * hidden + LANE * hidden
                         + hidden * second_pad + second_pad * LANE)
    bytes_accessed = (
        obs_bf.size * 2 + laser_bf.size * 2 + b_pad * LANE * 4
        + sum(int(kparams[k].size) * kparams[k].dtype.itemsize
              for k in ("wpre", "bpre", "w1o", "w1r", "w2", "b2", "w3", "b3")))

    out = pl.pallas_call(
        actor_kernel,
        out_shape=jax.ShapeDtypeStruct((b_pad, LANE), jnp.float32),
        grid=(steps,),
        in_specs=[
            act_spec(dim_obs),                    # obs (bf16, natural width)
            act_spec(dim_laser),                  # laser (bf16, natural width)
            resident((dim_laser, LANE)),          # wpre (padded out cols + bias-1 lane)
            resident((1, LANE)),                  # bpre (f32)
            resident((dim_obs, hidden)),          # w1 obs part
            resident((LANE, hidden)),             # w1 PreFC part + folded b1 row
            resident((hidden, second_pad)),       # w2 (second hidden padded to 128)
            resident((1, second_pad)),            # b2 (f32)
            resident((second_pad, LANE)),         # w3 (padded rows + out cols)
            resident((1, LANE)),                  # b3 (f32)
        ],
        out_specs=pl.BlockSpec((tile_b, LANE), lambda i: (i, 0)),
        compiler_params=pltpu.CompilerParams(
            dimension_semantics=("parallel",),    # shard batch across TCs (v7x)
        ),
        cost_estimate=pl.CostEstimate(
            flops=flops,
            transcendentals=b_pad * LANE,
            bytes_accessed=bytes_accessed,
        ),
    )(obs_bf, laser_bf,
      kparams["wpre"], kparams["bpre"],
      kparams["w1o"], kparams["w1r"],
      kparams["w2"], kparams["b2"],
      kparams["w3"], kparams["b3"])

    return out[:B, :dim_action]


def prepare_kernel_params(params, dim_observation, dim_action):
    """One-time packing of the f32 (in,out)/(1,out) params into padded bf16 kernel operands."""
    wpre, bpre = params["wpre"], params["bpre"]
    w1, b1 = params["w1"], params["b1"]
    w2, b2 = params["w2"], params["b2"]
    w3, b3 = params["w3"], params["b3"]

    dim_laser, las_output = wpre.shape
    hidden = w1.shape[1]
    second = w2.shape[1]
    assert las_output + 1 <= LANE
    second_pad = _round_up(second, LANE)

    # PreFC outputs live at lanes [0, las_output); lane `las_output` becomes a
    # constant 1.0 after relu (bias-fold trick for b1); remaining lanes are zero.
    wpre_k = jnp.zeros((dim_laser, LANE), jnp.float32).at[:, :las_output].set(wpre)
    bpre_k = jnp.zeros((1, LANE), jnp.float32).at[:, :las_output].set(bpre)
    bpre_k = bpre_k.at[0, las_output].set(1.0)

    # FC1 split: obs part (K = dim_obs) and PreFC/bias part (K = 128).
    w1o_k = w1[:dim_observation, :]
    w1r_k = jnp.zeros((LANE, hidden), jnp.float32)
    w1r_k = w1r_k.at[:las_output, :].set(w1[dim_observation:, :])
    w1r_k = w1r_k.at[las_output, :].set(b1[0])          # folded b1

    # FC2/FC3 padded to uniform 128-lane MXU tiles; padded rows/cols are zero so
    # the padded lanes of h2 (relu(0)=0) and of the output (tanh(0)*0.5=0) vanish.
    w2_k = jnp.zeros((hidden, second_pad), jnp.float32).at[:, :second].set(w2)
    b2_k = jnp.zeros((1, second_pad), jnp.float32).at[:, :second].set(b2)
    w3_k = jnp.zeros((second_pad, LANE), jnp.float32).at[:second, :dim_action].set(w3)
    b3_k = jnp.zeros((1, LANE), jnp.float32).at[:, :dim_action].set(b3)

    bf16 = jnp.bfloat16
    return dict(
        wpre=wpre_k.astype(bf16), bpre=bpre_k,
        w1o=w1o_k.astype(bf16), w1r=w1r_k.astype(bf16),
        w2=w2_k.astype(bf16), b2=b2_k,
        w3=w3_k.astype(bf16), b3=b3_k,
    )


def init_params(key, dim_observation, dim_action, dim_laser,
                las_output=10, hidden_layer=128, second_hidden_layer=64):
    """Deterministic synthetic init; weights stored as (in, out), biases as (1, out)."""
    ks = jax.random.split(key, 8)

    def lin(kw, kb, fan_in, fan_out):
        bound = 1.0 / jnp.sqrt(jnp.float32(fan_in))
        w = jax.random.uniform(kw, (fan_in, fan_out), jnp.float32, -bound, bound)
        b = jax.random.uniform(kb, (1, fan_out), jnp.float32, -bound, bound)
        return w, b

    wpre, bpre = lin(ks[0], ks[1], dim_laser, las_output)
    w1, b1 = lin(ks[2], ks[3], dim_observation + las_output, hidden_layer)
    w2, b2 = lin(ks[4], ks[5], hidden_layer, second_hidden_layer)
    w3, b3 = lin(ks[6], ks[7], second_hidden_layer, dim_action)
    return dict(wpre=wpre, bpre=bpre, w1=w1, b1=b1, w2=w2, b2=b2, w3=w3, b3=b3)


def actor_reference(obs, laser, params):
    """Plain-JAX f32 reference mirroring the PyTorch forward exactly."""
    r = jax.nn.relu(laser @ params["wpre"] + params["bpre"])
    c = jnp.concatenate([obs, r], axis=1)
    h1 = jax.nn.relu(c @ params["w1"] + params["b1"])
    h2 = jax.nn.relu(h1 @ params["w2"] + params["b2"])
    return jnp.tanh(h2 @ params["w3"] + params["b3"]) * 0.5


if __name__ == "__main__":
    dim_observation = 16
    dim_action = 3
    dim_laser = 32
    las_output = 10
    hidden_layer = 128
    second_hidden_layer = 64

    key = jax.random.PRNGKey(0)
    k_obs, k_laser, k_params = jax.random.split(key, 3)

    params = init_params(k_params, dim_observation, dim_action, dim_laser,
                         las_output, hidden_layer, second_hidden_layer)
    kparams = prepare_kernel_params(params, dim_observation, dim_action)

    # Case 1: small batch (module-scale) -> single fat grid step.
    # Case 2: larger batch -> even 2-step grid + batch-padding path exercised.
    for batch, split_threshold in ((20, 512), (600, 512)):
        k_o, k_l = jax.random.split(jax.random.fold_in(k_obs, batch), 2)
        obs = jax.random.normal(k_o, (batch, dim_observation), jnp.float32)
        laser = jax.random.normal(k_l, (batch, dim_laser), jnp.float32)

        out = actor_forward(obs, laser, kparams, dim_action,
                            split_threshold=split_threshold)
        out = jax.block_until_ready(out)
        ref = jax.block_until_ready(actor_reference(obs, laser, params))

        assert out.shape == (batch, dim_action)
        # bf16 MXU operands / bf16 streamed activations with f32 accumulation.
        assert jnp.max(jnp.abs(out - ref)) < 2e-2

    print("KERNEL_OK")
</pallas_src>

<mosaic_0001>
module attributes {stable_mosaic.version = 11 : i64} {
  func.func @actor_kernel(%arg0: i32, %arg1: memref<24x16xbf16, #tpu.memory_space<vmem>>, %arg2: memref<24x32xbf16, #tpu.memory_space<vmem>>, %arg3: memref<32x128xbf16, #tpu.memory_space<vmem>>, %arg4: memref<1x128xf32, #tpu.memory_space<vmem>>, %arg5: memref<16x128xbf16, #tpu.memory_space<vmem>>, %arg6: memref<128x128xbf16, #tpu.memory_space<vmem>>, %arg7: memref<128x128xbf16, #tpu.memory_space<vmem>>, %arg8: memref<1x128xf32, #tpu.memory_space<vmem>>, %arg9: memref<128x128xbf16, #tpu.memory_space<vmem>>, %arg10: memref<1x128xf32, #tpu.memory_space<vmem>>, %arg11: memref<24x128xf32, #tpu.memory_space<vmem>>) attributes {dimension_semantics = [#tpu.dimension_semantics<parallel>], iteration_bounds = array<i64: 1>, scalar_prefetch = 0 : i64, scratch_operands = 0 : i64, tpu.core_type = #tpu.core_type<tc>, window_params = [{transform_indices = @transform_0, window_bounds = array<i64: 24, 16>}, {transform_indices = @transform_1, window_bounds = array<i64: 24, 32>}, {pipeline_mode = #tpu.pipeline_mode<synchronous>, transform_indices = @transform_2, window_bounds = array<i64: 32, 128>}, {pipeline_mode = #tpu.pipeline_mode<synchronous>, transform_indices = @transform_3, window_bounds = array<i64: 1, 128>}, {pipeline_mode = #tpu.pipeline_mode<synchronous>, transform_indices = @transform_4, window_bounds = array<i64: 16, 128>}, {pipeline_mode = #tpu.pipeline_mode<synchronous>, transform_indices = @transform_5, window_bounds = array<i64: 128, 128>}, {pipeline_mode = #tpu.pipeline_mode<synchronous>, transform_indices = @transform_6, window_bounds = array<i64: 128, 128>}, {pipeline_mode = #tpu.pipeline_mode<synchronous>, transform_indices = @transform_7, window_bounds = array<i64: 1, 128>}, {pipeline_mode = #tpu.pipeline_mode<synchronous>, transform_indices = @transform_8, window_bounds = array<i64: 128, 128>}, {pipeline_mode = #tpu.pipeline_mode<synchronous>, transform_indices = @transform_9, window_bounds = array<i64: 1, 128>}, {transform_indices = @transform_10, window_bounds = array<i64: 24, 128>}]} {
    %c0 = arith.constant 0 : index
    %c0_0 = arith.constant 0 : index
    %0 = vector.load %arg2[%c0, %c0_0] : memref<24x32xbf16, #tpu.memory_space<vmem>>, vector<24x32xbf16>
    %c0_1 = arith.constant 0 : index
    %c0_2 = arith.constant 0 : index
    %1 = vector.load %arg3[%c0_1, %c0_2] : memref<32x128xbf16, #tpu.memory_space<vmem>>, vector<32x128xbf16>
    %cst = arith.constant dense<0.000000e+00> : vector<24x128xf32>
    %2 = tpu.matmul %0, %1, %cst {dimension_numbers = #tpu.dot_dimension_numbers<[1], [0], [0], [1], [0, 0, 1, 1], [], []>} : vector<24x32xbf16>, vector<32x128xbf16>, vector<24x128xf32> -> vector<24x128xf32>
    %c0_3 = arith.constant 0 : index
    %c0_4 = arith.constant 0 : index
    %3 = vector.load %arg4[%c0_3, %c0_4] : memref<1x128xf32, #tpu.memory_space<vmem>>, vector<1x128xf32>
    %4 = vector.broadcast %3 : vector<1x128xf32> to vector<24x128xf32>
    %5 = arith.addf %2, %4 : vector<24x128xf32>
    %cst_5 = arith.constant 0.000000e+00 : f32
    %6 = vector.broadcast %cst_5 : f32 to vector<24x128xf32>
    %7 = arith.maximumf %5, %6 : vector<24x128xf32>
    %c0_6 = arith.constant 0 : index
    %c0_7 = arith.constant 0 : index
    %8 = vector.load %arg1[%c0_6, %c0_7] : memref<24x16xbf16, #tpu.memory_space<vmem>>, vector<24x16xbf16>
    %c0_8 = arith.constant 0 : index
    %c0_9 = arith.constant 0 : index
    %9 = vector.load %arg5[%c0_8, %c0_9] : memref<16x128xbf16, #tpu.memory_space<vmem>>, vector<16x128xbf16>
    %cst_10 = arith.constant dense<0.000000e+00> : vector<24x128xf32>
    %10 = tpu.matmul %8, %9, %cst_10 {dimension_numbers = #tpu.dot_dimension_numbers<[1], [0], [0], [1], [0, 0, 1, 1], [], []>} : vector<24x16xbf16>, vector<16x128xbf16>, vector<24x128xf32> -> vector<24x128xf32>
    %11 = arith.truncf %7 : vector<24x128xf32> to vector<24x128xbf16>
    %c0_11 = arith.constant 0 : index
    %c0_12 = arith.constant 0 : index
    %12 = vector.load %arg6[%c0_11, %c0_12] : memref<128x128xbf16, #tpu.memory_space<vmem>>, vector<128x128xbf16>
    %cst_13 = arith.constant dense<0.000000e+00> : vector<24x128xf32>
    %13 = tpu.matmul %11, %12, %cst_13 {dimension_numbers = #tpu.dot_dimension_numbers<[1], [0], [0], [1], [0, 0, 1, 1], [], []>} : vector<24x128xbf16>, vector<128x128xbf16>, vector<24x128xf32> -> vector<24x128xf32>
    %14 = arith.addf %10, %13 : vector<24x128xf32>
    %cst_14 = arith.constant 0.000000e+00 : f32
    %15 = vector.broadcast %cst_14 : f32 to vector<24x128xf32>
    %16 = arith.maximumf %14, %15 : vector<24x128xf32>
    %17 = arith.truncf %16 : vector<24x128xf32> to vector<24x128xbf16>
    %c0_15 = arith.constant 0 : index
    %c0_16 = arith.constant 0 : index
    %18 = vector.load %arg7[%c0_15, %c0_16] : memref<128x128xbf16, #tpu.memory_space<vmem>>, vector<128x128xbf16>
    %cst_17 = arith.constant dense<0.000000e+00> : vector<24x128xf32>
    %19 = tpu.matmul %17, %18, %cst_17 {dimension_numbers = #tpu.dot_dimension_numbers<[1], [0], [0], [1], [0, 0, 1, 1], [], []>} : vector<24x128xbf16>, vector<128x128xbf16>, vector<24x128xf32> -> vector<24x128xf32>
    %c0_18 = arith.constant 0 : index
    %c0_19 = arith.constant 0 : index
    %20 = vector.load %arg8[%c0_18, %c0_19] : memref<1x128xf32, #tpu.memory_space<vmem>>, vector<1x128xf32>
    %21 = vector.broadcast %20 : vector<1x128xf32> to vector<24x128xf32>
    %22 = arith.addf %19, %21 : vector<24x128xf32>
    %cst_20 = arith.constant 0.000000e+00 : f32
    %23 = vector.broadcast %cst_20 : f32 to vector<24x128xf32>
    %24 = arith.maximumf %22, %23 : vector<24x128xf32>
    %25 = arith.truncf %24 : vector<24x128xf32> to vector<24x128xbf16>
    %c0_21 = arith.constant 0 : index
    %c0_22 = arith.constant 0 : index
    %26 = vector.load %arg9[%c0_21, %c0_22] : memref<128x128xbf16, #tpu.memory_space<vmem>>, vector<128x128xbf16>
    %cst_23 = arith.constant dense<0.000000e+00> : vector<24x128xf32>
    %27 = tpu.matmul %25, %26, %cst_23 {dimension_numbers = #tpu.dot_dimension_numbers<[1], [0], [0], [1], [0, 0, 1, 1], [], []>} : vector<24x128xbf16>, vector<128x128xbf16>, vector<24x128xf32> -> vector<24x128xf32>
    %c0_24 = arith.constant 0 : index
    %c0_25 = arith.constant 0 : index
    %28 = vector.load %arg10[%c0_24, %c0_25] : memref<1x128xf32, #tpu.memory_space<vmem>>, vector<1x128xf32>
    %29 = vector.broadcast %28 : vector<1x128xf32> to vector<24x128xf32>
    %30 = arith.addf %27, %29 : vector<24x128xf32>
    %31 = math.tanh %30 : vector<24x128xf32>
    %cst_26 = arith.constant 5.000000e-01 : f32
    %32 = vector.broadcast %cst_26 : f32 to vector<24x128xf32>
    %33 = arith.mulf %31, %32 : vector<24x128xf32>
    %c0_27 = arith.constant 0 : index
    %c0_28 = arith.constant 0 : index
    %34 = vector.load %arg11[%c0_27, %c0_28] : memref<24x128xf32, #tpu.memory_space<vmem>>, vector<24x128xf32>
    tpu.vector_store %arg11[%c0_27, %c0_28], %33 {strides = array<i32>} : memref<24x128xf32, #tpu.memory_space<vmem>>, vector<24x128xf32>,
    return
  }
  func.func @transform_0(%arg0: i32) -> (i32, i32) {
    %c0_i32 = arith.constant 0 : i32
    %c0_i32_0 = arith.constant 0 : i32
    return %arg0, %c0_i32 : i32, i32
  }
  func.func @transform_1(%arg0: i32) -> (i32, i32) {
    %c0_i32 = arith.constant 0 : i32
    %c0_i32_0 = arith.constant 0 : i32
    return %arg0, %c0_i32 : i32, i32
  }
  func.func @transform_2(%arg0: i32) -> (i32, i32) {
    %c0_i32 = arith.constant 0 : i32
    %c0_i32_0 = arith.constant 0 : i32
    %c0_i32_1 = arith.constant 0 : i32
    return %c0_i32, %c0_i32_0 : i32, i32
  }
  func.func @transform_3(%arg0: i32) -> (i32, i32) {
    %c0_i32 = arith.constant 0 : i32
    %c0_i32_0 = arith.constant 0 : i32
    %c0_i32_1 = arith.constant 0 : i32
    return %c0_i32, %c0_i32_0 : i32, i32
  }
  func.func @transform_4(%arg0: i32) -> (i32, i32) {
    %c0_i32 = arith.constant 0 : i32
    %c0_i32_0 = arith.constant 0 : i32
    %c0_i32_1 = arith.constant 0 : i32
    return %c0_i32, %c0_i32_0 : i32, i32
  }
  func.func @transform_5(%arg0: i32) -> (i32, i32) {
    %c0_i32 = arith.constant 0 : i32
    %c0_i32_0 = arith.constant 0 : i32
    %c0_i32_1 = arith.constant 0 : i32
    return %c0_i32, %c0_i32_0 : i32, i32
  }
  func.func @transform_6(%arg0: i32) -> (i32, i32) {
    %c0_i32 = arith.constant 0 : i32
    %c0_i32_0 = arith.constant 0 : i32
    %c0_i32_1 = arith.constant 0 : i32
    return %c0_i32, %c0_i32_0 : i32, i32
  }
  func.func @transform_7(%arg0: i32) -> (i32, i32) {
    %c0_i32 = arith.constant 0 : i32
    %c0_i32_0 = arith.constant 0 : i32
    %c0_i32_1 = arith.constant 0 : i32
    return %c0_i32, %c0_i32_0 : i32, i32
  }
  func.func @transform_8(%arg0: i32) -> (i32, i32) {
    %c0_i32 = arith.constant 0 : i32
    %c0_i32_0 = arith.constant 0 : i32
    %c0_i32_1 = arith.constant 0 : i32
    return %c0_i32, %c0_i32_0 : i32, i32
  }
  func.func @transform_9(%arg0: i32) -> (i32, i32) {
    %c0_i32 = arith.constant 0 : i32
    %c0_i32_0 = arith.constant 0 : i32
    %c0_i32_1 = arith.constant 0 : i32
    return %c0_i32, %c0_i32_0 : i32, i32
  }
  func.func @transform_10(%arg0: i32) -> (i32, i32) {
    %c0_i32 = arith.constant 0 : i32
    %c0_i32_0 = arith.constant 0 : i32
    return %arg0, %c0_i32 : i32, i32
  }
}

</mosaic_0001>

<llo_original>
// kernel: tpu_custom_call.1
$region0: #{tpu_custom_call.1}
  #allocation0 [shape = 'u32[]', space=smem, size = 0x4, offset = 0x4, fixed_abs, tag = 'smem constant byte address 0x4 - core index']
  #allocation1 [shape = 'u32[72,128]{1,0:T(1,128)}', space=vmem, size = 0x9000, scoped, tag = 'internal scratch']
  %s0 = inlined_call_operand.vmem [shape: bf16[24,16], index: 0, kind: input, shape index: {}]
  %s1 = inlined_call_operand.hbm [shape: bf16[24,32], index: 1, kind: input, shape index: {}]
  %s2 = inlined_call_operand.vmem [shape: bf16[32,128], index: 2, kind: input, shape index: {}]
  %s3 = inlined_call_operand.vmem [shape: f32[1,128], index: 3, kind: input, shape index: {}]
  %s4 = inlined_call_operand.hbm [shape: bf16[16,128], index: 4, kind: input, shape index: {}]
  %s5 = inlined_call_operand.hbm [shape: bf16[128,128], index: 5, kind: input, shape index: {}]
  %s6 = inlined_call_operand.hbm [shape: bf16[128,128], index: 6, kind: input, shape index: {}]
  %s7 = inlined_call_operand.vmem [shape: f32[1,128], index: 7, kind: input, shape index: {}]
  %s8 = inlined_call_operand.hbm [shape: bf16[128,128], index: 8, kind: input, shape index: {}]
  %s9 = inlined_call_operand.vmem [shape: f32[1,128], index: 9, kind: input, shape index: {}]
  %s10 = inlined_call_operand.hbm [shape: f32[24,128], index: 10, kind: output, shape index: {}]
  %s11 = sld [smem:[#allocation0]]
  $region70: #{tpu_custom_call.1} parent=0
    _
  %s13 = ssub.s32 1, %s11
  %s14 = scalar_select 0, %s13, %s11
  $region1: #{tpu_custom_call.1} parent=0
    #allocation2 [shape = 'u8[6144]{0}', space=vmem, size = 0x1800, scoped, tag = 'input window, operand 1, single buffered']
    #allocation3 [shape = 's32[1]{0}', space=sflag, size = 0x4, scoped, tag = 'scoped memory for tpu_custom_call.1']
    #allocation4 [shape = 's32[1]{0}', space=sflag, size = 0x4, scoped, tag = 'scoped memory for tpu_custom_call.1']
    #allocation5 [shape = 'u8[4096]{0}', space=vmem, size = 0x1000, scoped, tag = 'input window, operand 4, single buffered']
    #allocation6 [shape = 's32[1]{0}', space=sflag, size = 0x4, scoped, tag = 'scoped memory for tpu_custom_call.1']
    #allocation7 [shape = 'u8[32768]{0}', space=vmem, size = 0x8000, scoped, tag = 'input window, operand 5, single buffered']
    #allocation8 [shape = 'u8[32768]{0}', space=vmem, size = 0x8000, scoped, tag = 'input window, operand 6, single buffered']
    #allocation9 [shape = 's32[1]{0}', space=sflag, size = 0x4, scoped, tag = 'scoped memory for tpu_custom_call.1']
    #allocation10 [shape = 'u8[32768]{0}', space=vmem, size = 0x8000, scoped, tag = 'input window, operand 8, single buffered']
    #allocation11 [shape = 'u8[12288]{0}', space=vmem, size = 0x3000, scoped, tag = 'output window, operand 0, single buffered']
    %15 = vsyncpa [#allocation3], 0
    %16 = vsyncpa [#allocation6], 0
    %17 = vsyncpa [#allocation9], 0
    %18 = vsyncpa [#allocation4], 0
    // Predicated region
    $region2: #{tpu_custom_call.1} parent=1 // pred_check
      _
    $region3: #{tpu_custom_call.1} parent=1 // pred_check_branch
      %20 = sbr.rel (0) target = $region5
    $region4: #{tpu_custom_call.1} parent=1 // pred_region
      _
    $region5: #{tpu_custom_call.1} parent=1 // pred_fallthru
      _
    // Predicated region
    $region6: #{tpu_custom_call.1} parent=1 // pred_check
      _
    $region7: #{tpu_custom_call.1} parent=1 // pred_check_branch
      %22 = sbr.rel (0) target = $region9
    $region8: #{tpu_custom_call.1} parent=1 // pred_region
      %24 = vsyncadd [#allocation3], 0
      %s25 = sshll.u32 %s1, 4
      %s26 = int_to_ptr.hbm [resolvable:$true] %s25
      %s27 = sshll.u32 [#allocation2], 4
      %s28 = int_to_ptr.vmem [resolvable:$true] %s27
      %33 = dma.hbm_to_vmem [thread:$0]  %s26, 192, %s28, [#allocation3], 64, 64, 4
    $region9: #{tpu_custom_call.1} parent=1 // pred_fallthru
      _
    // Predicated region
    $region10: #{tpu_custom_call.1} parent=1 // pred_check
      _
    $region11: #{tpu_custom_call.1} parent=1 // pred_check_branch
      %35 = sbr.rel (0) target = $region13
    $region12: #{tpu_custom_call.1} parent=1 // pred_region
      _
    $region13: #{tpu_custom_call.1} parent=1 // pred_fallthru
      _
    // Predicated region
    $region14: #{tpu_custom_call.1} parent=1 // pred_check
      _
    $region15: #{tpu_custom_call.1} parent=1 // pred_check_branch
      %37 = sbr.rel (0) target = $region17
    $region16: #{tpu_custom_call.1} parent=1 // pred_region
      _
    $region17: #{tpu_custom_call.1} parent=1 // pred_fallthru
      _
    // Predicated region
    $region18: #{tpu_custom_call.1} parent=1 // pred_check
      _
    $region19: #{tpu_custom_call.1} parent=1 // pred_check_branch
      %39 = sbr.rel (0) target = $region21
    $region20: #{tpu_custom_call.1} parent=1 // pred_region
      %41 = vsyncadd [#allocation6], 0
      %s42 = sshll.u32 %s4, 4
      %s43 = int_to_ptr.hbm [resolvable:$true] %s42
      %s44 = sshll.u32 [#allocation5], 4
      %s45 = int_to_ptr.vmem [resolvable:$true] %s44
      %50 = dma.hbm_to_vmem [thread:$0]  %s43, 128, %s45, [#allocation6], 64, 64, 4
    $region21: #{tpu_custom_call.1} parent=1 // pred_fallthru
      _
    // Predicated region
    $region22: #{tpu_custom_call.1} parent=1 // pred_check
      _
    $region23: #{tpu_custom_call.1} parent=1 // pred_check_branch
      %52 = sbr.rel (0) target = $region25
    $region24: #{tpu_custom_call.1} parent=1 // pred_region
      %54 = vsyncadd [#allocation6], 0
      %s55 = sshll.u32 %s5, 4
      %s56 = int_to_ptr.hbm [resolvable:$true] %s55
      %s57 = sshll.u32 [#allocation7], 4
      %s58 = int_to_ptr.vmem [resolvable:$true] %s57
      %63 = dma.hbm_to_vmem [thread:$0]  %s56, 1024, %s58, [#allocation6], 64, 64, 4
    $region25: #{tpu_custom_call.1} parent=1 // pred_fallthru
      _
    // Predicated region
    $region26: #{tpu_custom_call.1} parent=1 // pred_check
      _
    $region27: #{tpu_custom_call.1} parent=1 // pred_check_branch
      %65 = sbr.rel (0) target = $region29
    $region28: #{tpu_custom_call.1} parent=1 // pred_region
      %67 = vsyncadd [#allocation9], 0
      %s68 = sshll.u32 %s6, 4
      %s69 = int_to_ptr.hbm [resolvable:$true] %s68
      %s70 = sshll.u32 [#allocation8], 4
      %s71 = int_to_ptr.vmem [resolvable:$true] %s70
      %76 = dma.hbm_to_vmem [thread:$0]  %s69, 1024, %s71, [#allocation9], 64, 64, 4
    $region29: #{tpu_custom_call.1} parent=1 // pred_fallthru
      _
    // Predicated region
    $region30: #{tpu_custom_call.1} parent=1 // pred_check
      _
    $region31: #{tpu_custom_call.1} parent=1 // pred_check_branch
      %78 = sbr.rel (0) target = $region33
    $region32: #{tpu_custom_call.1} parent=1 // pred_region
      _
    $region33: #{tpu_custom_call.1} parent=1 // pred_fallthru
      _
    // Predicated region
    $region34: #{tpu_custom_call.1} parent=1 // pred_check
      _
    $region35: #{tpu_custom_call.1} parent=1 // pred_check_branch
      %80 = sbr.rel (0) target = $region37
    $region36: #{tpu_custom_call.1} parent=1 // pred_region
      %82 = vsyncadd [#allocation9], 0
      %s83 = sshll.u32 %s8, 4
      %s84 = int_to_ptr.hbm [resolvable:$true] %s83
      %s85 = sshll.u32 [#allocation10], 4
      %s86 = int_to_ptr.vmem [resolvable:$true] %s85
      %91 = dma.hbm_to_vmem [thread:$0]  %s84, 1024, %s86, [#allocation9], 64, 64, 4
    $region37: #{tpu_custom_call.1} parent=1 // pred_fallthru
      _
    // Predicated region
    $region38: #{tpu_custom_call.1} parent=1 // pred_check
      _
    $region39: #{tpu_custom_call.1} parent=1 // pred_check_branch
      %93 = sbr.rel (0) target = $region41
    $region40: #{tpu_custom_call.1} parent=1 // pred_region
      _
    $region41: #{tpu_custom_call.1} parent=1 // pred_fallthru
      _
    // Predicated region
    $region42: #{tpu_custom_call.1} parent=1 // pred_check
      _
    $region43: #{tpu_custom_call.1} parent=1 // pred_check_branch
      %95 = sbr.rel (0) target = $region45
    $region44: #{tpu_custom_call.1} parent=1 // pred_region
      %97 = dma.done [#allocation3], 192
    $region45: #{tpu_custom_call.1} parent=1 // pred_fallthru
      _
    // Predicated region
    $region46: #{tpu_custom_call.1} parent=1 // pred_check
      _
    $region47: #{tpu_custom_call.1} parent=1 // pred_check_branch
      %99 = sbr.rel (0) target = $region49
    $region48: #{tpu_custom_call.1} parent=1 // pred_region
      %101 = dma.done [#allocation6], 128
    $region49: #{tpu_custom_call.1} parent=1 // pred_fallthru
      _
    // Predicated region
    $region50: #{tpu_custom_call.1} parent=1 // pred_check
      _
    $region51: #{tpu_custom_call.1} parent=1 // pred_check_branch
      %103 = sbr.rel (0) target = $region53
    $region52: #{tpu_custom_call.1} parent=1 // pred_region
      %105 = dma.done [#allocation6], 1024
    $region53: #{tpu_custom_call.1} parent=1 // pred_fallthru
      _
    // Predicated region
    $region54: #{tpu_custom_call.1} parent=1 // pred_check
      _
    $region55: #{tpu_custom_call.1} parent=1 // pred_check_branch
      %107 = sbr.rel (0) target = $region57
    $region56: #{tpu_custom_call.1} parent=1 // pred_region
      %109 = dma.done [#allocation9], 1024
    $region57: #{tpu_custom_call.1} parent=1 // pred_fallthru
      _
    // Predicated region
    $region58: #{tpu_custom_call.1} parent=1 // pred_check
      _
    $region59: #{tpu_custom_call.1} parent=1 // pred_check_branch
      %111 = sbr.rel (0) target = $region61
    $region60: #{tpu_custom_call.1} parent=1 // pred_region
      %113 = dma.done [#allocation9], 1024
    $region61: #{tpu_custom_call.1} parent=1 // pred_fallthru
      _
    %v115 = vld [vmem:[#allocation2] sm:$0xf]
    %v116 = vld [vmem:[#allocation2 + $0x4] sm:$0xf]
    %v117 = vld [vmem:[#allocation2 + $0x8] sm:$0xf]
    %v118 = vld [vmem:[%s2] sm:$0xf]
    %v119 = vld [vmem:[%s2 + $0x4] sm:$0xf]
    %v120 = vld [vmem:[%s2 + $0x8] sm:$0xf]
    %v121 = vld [vmem:[%s2 + $0xc] sm:$0xf]
    %v122 = vld [vmem:[%s3] sm:$0x1]
    %v124 = vperm.slane %v122, 0
    %v129 = vunpack.c.l.b16 %v115
    %v130 = vunpack.c.l.b16 %v116
    %v131 = vunpack.c.l.b16 %v117
    %v132 = vpack.c.b16 %v130, %v129
    %v133 = vpack.c.b16 %v131, %v131
    %v138 = vunpack.c.l.b16 %v118
    %v139 = vunpack.c.l.b16 %v119
    %v140 = vunpack.c.l.b16 %v120
    %v141 = vunpack.c.l.b16 %v121
    %v142 = vpack.c.b16 %v139, %v138
    %v143 = vpack.c.b16 %v141, %v140
    %vm146 = vcmask 261120
    %v148 = vsel %vm146, %v132, 0
    %v151 = vsel %vm146, %v133, 0
    %153 = vmatpush.bf16.msra.mxu0 0
    %154 = vmatpush.bf16.msra.mxu0 0
    %155 = vmatpush.bf16.msra.mxu0 0
    %156 = vmatpush.bf16.msra.mxu0 0
    %157 = vmatpush.bf16.msra.mxu0 0
    %158 = vmatpush.bf16.msra.mxu0 0
    %159 = vmatpush.bf16.msra.mxu0 %v143
    %160 = vmatpush.bf16.msra.mxu0 %v142
    %161 = vmatmul.bf16.gmra.mxu0 %v148
    %v162 = vpop.f32.mrf.mxu0
    %v163 = vadd.f32 %v124, %v162
    %v164 = vpop.f32.mrf.mxu0
    %v165 = vadd.f32 %v124, %v164
    %166 = vmatmul.bf16.gmra.mxu0 %v151
    %v167 = vpop.f32.mrf.mxu0
    %v168 = vadd.f32 %v124, %v167
    %v169 = vpop.f32.mrf.mxu0
    %170 = vdwg.mxu0
    %v171 = vmax.f32 %v163, 0.0
    %v172 = vmax.f32 %v165, 0.0
    %v173 = vmax.f32 %v168, 0.0
    %v174 = vld [vmem:[%s0] sm:$0xf]
    %v175 = vld [vmem:[%s0 + $0x4] sm:$0xf]
    %v176 = vld [vmem:[%s0 + $0x8] sm:$0xf]
    %v177 = vld [vmem:[#allocation5] sm:$0xf]
    %v178 = vld [vmem:[#allocation5 + $0x4] sm:$0xf]
    %v179 = vpack.c.bf16 %v172, %v171
    %v180 = vpack.c.bf16 %v173, %v173
    %v181 = vld [vmem:[#allocation7] sm:$0xf]
    %v182 = vld [vmem:[#allocation7 + $0x4] sm:$0xf]
    %v183 = vld [vmem:[#allocation7 + $0x8] sm:$0xf]
    %v184 = vld [vmem:[#allocation7 + $0xc] sm:$0xf]
    %v185 = vld [vmem:[#allocation7 + $0x10] sm:$0xf]
    %v186 = vld [vmem:[#allocation7 + $0x14] sm:$0xf]
    %v187 = vld [vmem:[#allocation7 + $0x18] sm:$0xf]
    %v188 = vld [vmem:[#allocation7 + $0x1c] sm:$0xf]
    %v189 = vld [vmem:[#allocation7 + $0x20] sm:$0xf]
    %v190 = vld [vmem:[#allocation7 + $0x24] sm:$0xf]
    %v191 = vld [vmem:[#allocation7 + $0x28] sm:$0xf]
    %v192 = vld [vmem:[#allocation7 + $0x2c] sm:$0xf]
    %v193 = vld [vmem:[#allocation7 + $0x30] sm:$0xf]
    %v194 = vld [vmem:[#allocation7 + $0x34] sm:$0xf]
    %v195 = vld [vmem:[#allocation7 + $0x38] sm:$0xf]
    %v196 = vld [vmem:[#allocation7 + $0x3c] sm:$0xf]
    %v213 = vunpack.c.l.b16 %v181
    %v214 = vunpack.c.l.b16 %v182
    %v215 = vunpack.c.l.b16 %v183
    %v216 = vunpack.c.l.b16 %v184
    %v217 = vunpack.c.l.b16 %v185
    %v218 = vunpack.c.l.b16 %v186
    %v219 = vunpack.c.l.b16 %v187
    %v220 = vunpack.c.l.b16 %v188
    %v221 = vunpack.c.l.b16 %v189
    %v222 = vunpack.c.l.b16 %v190
    %v223 = vunpack.c.l.b16 %v191
    %v224 = vunpack.c.l.b16 %v192
    %v225 = vunpack.c.l.b16 %v193
    %v226 = vunpack.c.l.b16 %v194
    %v227 = vunpack.c.l.b16 %v195
    %v228 = vunpack.c.l.b16 %v196
    %v229 = vpack.c.b16 %v214, %v213
    %v230 = vpack.c.b16 %v216, %v215
    %v231 = vpack.c.b16 %v218, %v217
    %v232 = vpack.c.b16 %v220, %v219
    %v233 = vpack.c.b16 %v222, %v221
    %v234 = vpack.c.b16 %v224, %v223
    %v235 = vpack.c.b16 %v226, %v225
    %v236 = vpack.c.b16 %v228, %v227
    %245 = vmatpush.bf16.msra.mxu0 %v236
    %246 = vmatpush.bf16.msra.mxu0 %v235
    %247 = vmatpush.bf16.msra.mxu0 %v234
    %248 = vmatpush.bf16.msra.mxu0 %v233
    %249 = vmatpush.bf16.msra.mxu0 %v232
    %250 = vmatpush.bf16.msra.mxu0 %v231
    %251 = vmatpush.bf16.msra.mxu0 %v230
    %252 = vmatpush.bf16.msra.mxu0 %v229
    %253 = vmatmul.bf16.gmra.mxu0 %v179
    %v254 = vpop.f32.mrf.mxu0
    %v255 = vadd.f32 0.0, %v254
    %v256 = vpop.f32.mrf.mxu0
    %v257 = vadd.f32 0.0, %v256
    %258 = vmatmul.bf16.gmra.mxu0 %v180
    %v259 = vpop.f32.mrf.mxu0
    %v260 = vadd.f32 0.0, %v259
    %v261 = vpop.f32.mrf.mxu0
    %262 = vdwg.mxu0
    %v266 = vunpack.c.l.b16 %v174
    %v267 = vunpack.c.l.b16 %v175
    %v268 = vunpack.c.l.b16 %v176
    %v269 = vpack.c.b16 %v267, %v266
    %v270 = vpack.c.b16 %v268, %v268
    %v273 = vunpack.c.l.b16 %v177
    %v274 = vunpack.c.l.b16 %v178
    %v275 = vpack.c.b16 %v274, %v273
    %vm277 = vcmask 130048
    %v279 = vsel %vm277, %v269, 0
    %v282 = vsel %vm277, %v270, 0
    %284 = vmatpush.bf16.msra.mxu0 0
    %285 = vmatpush.bf16.msra.mxu0 0
    %286 = vmatpush.bf16.msra.mxu0 0
    %287 = vmatpush.bf16.msra.mxu0 0
    %288 = vmatpush.bf16.msra.mxu0 0
    %289 = vmatpush.bf16.msra.mxu0 0
    %290 = vmatpush.bf16.msra.mxu0 0
    %291 = vmatpush.bf16.msra.mxu0 %v275
    %292 = vmatmul.bf16.gmra.mxu0 %v279
    %v293 = vpop.f32.mrf.mxu0
    %v294 = vadd.f32 %v255, %v293
    %v295 = vpop.f32.mrf.mxu0
    %v296 = vadd.f32 %v257, %v295
    %297 = vmatmul.bf16.gmra.mxu0 %v282
    %v298 = vpop.f32.mrf.mxu0
    %v299 = vadd.f32 %v260, %v298
    %v300 = vpop.f32.mrf.mxu0
    %301 = vdwg.mxu0
    %v302 = vmax.f32 %v294, 0.0
    %v303 = vmax.f32 %v296, 0.0
    %v304 = vmax.f32 %v299, 0.0
    %v305 = vpack.c.bf16 %v303, %v302
    %v306 = vpack.c.bf16 %v304, %v304
    %v307 = vld [vmem:[#allocation8] sm:$0xf]
    %v308 = vld [vmem:[#allocation8 + $0x4] sm:$0xf]
    %v309 = vld [vmem:[#allocation8 + $0x8] sm:$0xf]
    %v310 = vld [vmem:[#allocation8 + $0xc] sm:$0xf]
    %v311 = vld [vmem:[#allocation8 + $0x10] sm:$0xf]
    %v312 = vld [vmem:[#allocation8 + $0x14] sm:$0xf]
    %v313 = vld [vmem:[#allocation8 + $0x18] sm:$0xf]
    %v314 = vld [vmem:[#allocation8 + $0x1c] sm:$0xf]
    %v315 = vld [vmem:[#allocation8 + $0x20] sm:$0xf]
    %v316 = vld [vmem:[#allocation8 + $0x24] sm:$0xf]
    %v317 = vld [vmem:[#allocation8 + $0x28] sm:$0xf]
    %v318 = vld [vmem:[#allocation8 + $0x2c] sm:$0xf]
    %v319 = vld [vmem:[#allocation8 + $0x30] sm:$0xf]
    %v320 = vld [vmem:[#allocation8 + $0x34] sm:$0xf]
    %v321 = vld [vmem:[#allocation8 + $0x38] sm:$0xf]
    %v322 = vld [vmem:[#allocation8 + $0x3c] sm:$0xf]
    %v323 = vld [vmem:[%s7] sm:$0x1]
    %v325 = vperm.slane %v323, 0
    %v343 = vunpack.c.l.b16 %v307
    %v344 = vunpack.c.l.b16 %v308
    %v345 = vunpack.c.l.b16 %v309
    %v346 = vunpack.c.l.b16 %v310
    %v347 = vunpack.c.l.b16 %v311
    %v348 = vunpack.c.l.b16 %v312
    %v349 = vunpack.c.l.b16 %v313
    %v350 = vunpack.c.l.b16 %v314
    %v351 = vunpack.c.l.b16 %v315
    %v352 = vunpack.c.l.b16 %v316
    %v353 = vunpack.c.l.b16 %v317
    %v354 = vunpack.c.l.b16 %v318
    %v355 = vunpack.c.l.b16 %v319
    %v356 = vunpack.c.l.b16 %v320
    %v357 = vunpack.c.l.b16 %v321
    %v358 = vunpack.c.l.b16 %v322
    %v359 = vpack.c.b16 %v344, %v343
    %v360 = vpack.c.b16 %v346, %v345
    %v361 = vpack.c.b16 %v348, %v347
    %v362 = vpack.c.b16 %v350, %v349
    %v363 = vpack.c.b16 %v352, %v351
    %v364 = vpack.c.b16 %v354, %v353
    %v365 = vpack.c.b16 %v356, %v355
    %v366 = vpack.c.b16 %v358, %v357
    %375 = vmatpush.bf16.msra.mxu0 %v366
    %376 = vmatpush.bf16.msra.mxu0 %v365
    %377 = vmatpush.bf16.msra.mxu0 %v364
    %378 = vmatpush.bf16.msra.mxu0 %v363
    %379 = vmatpush.bf16.msra.mxu0 %v362
    %380 = vmatpush.bf16.msra.mxu0 %v361
    %381 = vmatpush.bf16.msra.mxu0 %v360
    %382 = vmatpush.bf16.msra.mxu0 %v359
    %383 = vmatmul.bf16.gmra.mxu0 %v305
    %v384 = vpop.f32.mrf.mxu0
    %v385 = vadd.f32 %v325, %v384
    %v386 = vpop.f32.mrf.mxu0
    %v387 = vadd.f32 %v325, %v386
    %388 = vmatmul.bf16.gmra.mxu0 %v306
    %v389 = vpop.f32.mrf.mxu0
    %v390 = vadd.f32 %v325, %v389
    %v391 = vpop.f32.mrf.mxu0
    %392 = vdwg.mxu0
    %v393 = vmax.f32 %v385, 0.0
    %v394 = vmax.f32 %v387, 0.0
    %v395 = vmax.f32 %v390, 0.0
    %v396 = vpack.c.bf16 %v394, %v393
    %v397 = vpack.c.bf16 %v395, %v395
    %v398 = vld [vmem:[#allocation10] sm:$0xf]
    %v399 = vld [vmem:[#allocation10 + $0x4] sm:$0xf]
    %v400 = vld [vmem:[#allocation10 + $0x8] sm:$0xf]
    %v401 = vld [vmem:[#allocation10 + $0xc] sm:$0xf]
    %v402 = vld [vmem:[#allocation10 + $0x10] sm:$0xf]
    %v403 = vld [vmem:[#allocation10 + $0x14] sm:$0xf]
    %v404 = vld [vmem:[#allocation10 + $0x18] sm:$0xf]
    %v405 = vld [vmem:[#allocation10 + $0x1c] sm:$0xf]
    %v406 = vld [vmem:[#allocation10 + $0x20] sm:$0xf]
    %v407 = vld [vmem:[#allocation10 + $0x24] sm:$0xf]
    %v408 = vld [vmem:[#allocation10 + $0x28] sm:$0xf]
    %v409 = vld [vmem:[#allocation10 + $0x2c] sm:$0xf]
    %v410 = vld [vmem:[#allocation10 + $0x30] sm:$0xf]
    %v411 = vld [vmem:[#allocation10 + $0x34] sm:$0xf]
    %v412 = vld [vmem:[#allocation10 + $0x38] sm:$0xf]
    %v413 = vld [vmem:[#allocation10 + $0x3c] sm:$0xf]
    %v414 = vld [vmem:[%s9] sm:$0x1]
    %v416 = vperm.slane %v414, 0
    %v434 = vunpack.c.l.b16 %v398
    %v435 = vunpack.c.l.b16 %v399
    %v436 = vunpack.c.l.b16 %v400
    %v437 = vunpack.c.l.b16 %v401
    %v438 = vunpack.c.l.b16 %v402
    %v439 = vunpack.c.l.b16 %v403
    %v440 = vunpack.c.l.b16 %v404
    %v441 = vunpack.c.l.b16 %v405
    %v442 = vunpack.c.l.b16 %v406
    %v443 = vunpack.c.l.b16 %v407
    %v444 = vunpack.c.l.b16 %v408
    %v445 = vunpack.c.l.b16 %v409
    %v446 = vunpack.c.l.b16 %v410
    %v447 = vunpack.c.l.b16 %v411
    %v448 = vunpack.c.l.b16 %v412
    %v449 = vunpack.c.l.b16 %v413
    %v450 = vpack.c.b16 %v435, %v434
    %v451 = vpack.c.b16 %v437, %v436
    %v452 = vpack.c.b16 %v439, %v438
    %v453 = vpack.c.b16 %v441, %v440
    %v454 = vpack.c.b16 %v443, %v442
    %v455 = vpack.c.b16 %v445, %v444
    %v456 = vpack.c.b16 %v447, %v446
    %v457 = vpack.c.b16 %v449, %v448
    %466 = vmatpush.bf16.msra.mxu0 %v457
    %467 = vmatpush.bf16.msra.mxu0 %v456
    %468 = vmatpush.bf16.msra.mxu0 %v455
    %469 = vmatpush.bf16.msra.mxu0 %v454
    %470 = vmatpush.bf16.msra.mxu0 %v453
    %471 = vmatpush.bf16.msra.mxu0 %v452
    %472 = vmatpush.bf16.msra.mxu0 %v451
    %473 = vmatpush.bf16.msra.mxu0 %v450
    %474 = vmatmul.bf16.gmra.mxu0 %v396
    %v475 = vpop.f32.mrf.mxu0
    %v476 = vadd.f32 %v416, %v475
    %v477 = vpop.f32.mrf.mxu0
    %v478 = vadd.f32 %v416, %v477
    %479 = vmatmul.bf16.gmra.mxu0 %v397
    %v480 = vpop.f32.mrf.mxu0
    %v481 = vadd.f32 %v416, %v480
    %v482 = vpop.f32.mrf.mxu0
    %483 = vdwg.mxu0
    %v484 = vtanh.pop %v476
    %v485 = vtanh.pop %v478
    %v486 = vtanh.pop %v481
    %v487 = vmul.f32 %v484, 0.5
    %v488 = vmul.f32 %v485, 0.5
    %v489 = vmul.f32 %v486, 0.5
    %490 = vst [vmem:[#allocation11] sm:$0xff] %v487
    %491 = vst [vmem:[#allocation11 + $0x8] sm:$0xff] %v488
    %492 = vst [vmem:[#allocation11 + $0x10] sm:$0xff] %v489
    // Predicated region
    $region62: #{tpu_custom_call.1} parent=1 // pred_check
      _
    $region63: #{tpu_custom_call.1} parent=1 // pred_check_branch
      %494 = sbr.rel (0) target = $region65
    $region64: #{tpu_custom_call.1} parent=1 // pred_region
      %496 = vsyncadd [#allocation4], 0
      %s497 = sshll.u32 [#allocation11], 4
      %s498 = int_to_ptr.vmem [resolvable:$true] %s497
      %s499 = sshll.u32 %s10, 4
      %s500 = int_to_ptr.hbm [resolvable:$true] %s499
      %505 = dma.vmem_to_hbm [thread:$0]  %s498, 384, %s500, [#allocation4], 128, 128, 8
    $region65: #{tpu_custom_call.1} parent=1 // pred_fallthru
      _
    // Predicated region
    $region66: #{tpu_custom_call.1} parent=1 // pred_check
      _
    $region67: #{tpu_custom_call.1} parent=1 // pred_check_branch
      %507 = sbr.rel (0) target = $region69
    $region68: #{tpu_custom_call.1} parent=1 // pred_region
      %509 = dma.done [#allocation4], 384
    $region69: #{tpu_custom_call.1} parent=1 // pred_fallthru
      _
    %510 = vsyncpa [#allocation3], 1
    %511 = vsyncpa [#allocation6], 1
    %512 = vsyncpa [#allocation9], 1
    %513 = vsyncpa [#allocation4], 1

</llo_original>
